<compile_context>
chip_gen: v7x
topology: tpu7x:2x2x1
jax: 0.10.0
libtpu: 0.0.40
codegen_flags: <defaults>
</compile_context>

<pallas_src>
import functools

import jax
import jax.numpy as jnp
from jax.experimental import pallas as pl
from jax.experimental.pallas import tpu as pltpu


def _ranking_loss_kernel(yt_ref, ys_ref, out_ref, *, n_samples, block_cols, n_labels):
    pid = pl.program_id(0)

    # Global sample (lane) index for this tile; mask the padded tail columns.
    col = pid * block_cols + jax.lax.broadcasted_iota(jnp.int32, (1, block_cols), 1)
    valid = col < n_samples                                         # (1, TN)

    s = ys_ref[...].astype(jnp.float32)                             # (L, TN) scores
    y = jnp.where(valid, yt_ref[...].astype(jnp.float32), 0.0)      # (L, TN) indicators
    neg = 1.0 - y

    # cnt[j, i] = #{k : y[k, i] == 0 and s[k, i] >= s[j, i]}  (ties are errors)
    cnt = jnp.zeros((n_labels, block_cols), jnp.float32)
    if n_labels <= 64:
        # Small L: fully unrolled, broadcast row k along sublanes, pure VPU ops.
        for k in range(n_labels):
            cnt = cnt + jnp.where(s[k:k + 1, :] >= s, neg[k:k + 1, :], 0.0)
    else:
        # Large L: loop over labels, re-reading row k straight from VMEM so the
        # live set stays O(L*TN) regardless of L.
        def body(k, acc):
            s_k = ys_ref[pl.ds(k, 1), :].astype(jnp.float32)        # (1, TN)
            y_k = yt_ref[pl.ds(k, 1), :].astype(jnp.float32)        # (1, TN)
            return acc + jnp.where(s_k >= s, 1.0 - y_k, 0.0)
        cnt = jax.lax.fori_loop(0, n_labels, body, cnt)

    incorrect = jnp.sum(y * cnt, axis=0, keepdims=True)             # (1, TN)
    n_pos = jnp.sum(y, axis=0, keepdims=True)                       # (1, TN)
    denom = n_pos * (jnp.float32(n_labels) - n_pos)
    safe = jnp.where(denom > 0.0, denom, 1.0)
    loss = jnp.where(denom > 0.0, incorrect / safe, 0.0)            # (1, TN)
    # Masked-out columns have y == 0 -> denom == 0 -> loss == 0 exactly.

    out_ref[...] = loss[None]                                       # (1, 1, TN)


def ranking_loss(predict_probs, true_labels, *, block_cols=None):
    """Pallas equivalent of Ranking_loss.forward(predict_probs, true_labels)."""
    n, l = true_labels.shape
    assert predict_probs.shape == (n, l)

    # Samples-on-lanes layout: labels on sublanes, samples on 128-wide lanes.
    yt = true_labels.T      # (L, N)
    ys = predict_probs.T    # (L, N)

    if block_cols is None:
        # Size the tile so one (L, TN) f32 plane is ~2 MiB; live intermediates
        # plus double-buffered inputs stay well under v7x's VMEM budget.
        plane_budget = 2 * 1024 * 1024
        block_cols = max(128, min(8192, (plane_budget // (4 * l)) // 128 * 128))
    if block_cols >= n:
        block_cols = n                                   # single full-extent tile
    else:
        block_cols = max(128, (block_cols // 128) * 128)  # lane-aligned tiles
    num_tiles = pl.cdiv(n, block_cols)

    kernel = functools.partial(
        _ranking_loss_kernel, n_samples=n, block_cols=block_cols, n_labels=l)

    in_bytes = yt.size * yt.dtype.itemsize + ys.size * ys.dtype.itemsize
    out_bytes = num_tiles * block_cols * 4
    cost = pl.CostEstimate(
        flops=3 * n * l * l + 10 * n * l,
        transcendentals=0,
        bytes_accessed=in_bytes + out_bytes,
    )

    partial_losses = pl.pallas_call(
        kernel,
        out_shape=jax.ShapeDtypeStruct((num_tiles, 1, block_cols), jnp.float32),
        grid_spec=pltpu.PrefetchScalarGridSpec(
            num_scalar_prefetch=0,
            grid=(num_tiles,),
            in_specs=[
                pl.BlockSpec((l, block_cols), lambda i: (0, i)),
                pl.BlockSpec((l, block_cols), lambda i: (0, i)),
            ],
            out_specs=pl.BlockSpec((1, 1, block_cols), lambda i: (i, 0, 0)),
        ),
        compiler_params=pltpu.CompilerParams(
            dimension_semantics=("parallel",),   # no cross-step dep; megacore-shardable
            vmem_limit_bytes=48 * 1024 * 1024,
        ),
        cost_estimate=cost,
    )(yt, ys)

    # Tiny final reduction (padded columns are exactly 0), divide by the true N.
    return jnp.sum(partial_losses) / jnp.float32(n)


def _ranking_loss_reference(predict_probs, true_labels):
    # Pure-JAX reference (same math as sklearn label_ranking_loss).
    y = true_labels.astype(jnp.float32)
    s = predict_probs.astype(jnp.float32)
    n, l = y.shape
    cmp = (s[:, None, :] >= s[:, :, None]).astype(jnp.float32)
    cnt = jnp.sum(cmp * (1.0 - y)[:, None, :], axis=2)
    incorrect = jnp.sum(y * cnt, axis=1)
    n_pos = y.sum(axis=1)
    denom = n_pos * (l - n_pos)
    loss = jnp.where(denom > 0.0, incorrect / jnp.where(denom > 0.0, denom, 1.0), 0.0)
    return loss.mean()


if __name__ == "__main__":
    key = jax.random.PRNGKey(0)
    k1, k2 = jax.random.split(key)
    N, L = 300, 16   # multilabel indicator matrix: n_samples x n_labels
    true_labels = jax.random.bernoulli(k1, 0.4, (N, L)).astype(jnp.float32)
    predict_probs = jax.random.uniform(k2, (N, L), dtype=jnp.float32)

    ref = _ranking_loss_reference(predict_probs, true_labels)

    # block_cols=128 -> 3 grid steps, masked partial last tile (300 = 2*128 + 44).
    loss = ranking_loss(predict_probs, true_labels, block_cols=128)
    jax.block_until_ready(loss)
    assert jnp.allclose(loss, ref, atol=1e-5, rtol=1e-5), (loss, ref)

    # Default tile heuristic -> single full-extent tile path.
    loss2 = ranking_loss(predict_probs, true_labels)
    jax.block_until_ready(loss2)
    assert jnp.allclose(loss2, ref, atol=1e-5, rtol=1e-5), (loss2, ref)

    print("KERNEL_OK")
</pallas_src>

<mosaic_0001>
module attributes {stable_mosaic.version = 11 : i64} {
  func.func @_ranking_loss_kernel(%arg0: i32, %arg1: memref<16x128xf32, #tpu.memory_space<vmem>>, %arg2: memref<16x128xf32, #tpu.memory_space<vmem>>, %arg3: memref<1x1x128xf32, #tpu.memory_space<vmem>>) attributes {dimension_semantics = [#tpu.dimension_semantics<parallel>], iteration_bounds = array<i64: 3>, scalar_prefetch = 0 : i64, scratch_operands = 0 : i64, tpu.core_type = #tpu.core_type<tc>, window_params = [{transform_indices = @transform_0, window_bounds = array<i64: 16, 128>}, {transform_indices = @transform_1, window_bounds = array<i64: 16, 128>}, {transform_indices = @transform_2, window_bounds = array<i64: 1, 1, 128>}]} {
    %c128_i32 = arith.constant 128 : i32
    %0 = arith.muli %arg0, %c128_i32 : i32
    %1 = tpu.iota {dimensions = array<i32: 1>} : vector<1x128xi32>
    %2 = vector.broadcast %0 : i32 to vector<1x128xi32>
    %3 = arith.addi %2, %1 : vector<1x128xi32>
    %c300_i32 = arith.constant 300 : i32
    %4 = vector.broadcast %c300_i32 : i32 to vector<1x128xi32>
    %5 = arith.cmpi slt, %3, %4 : vector<1x128xi32>
    %c0 = arith.constant 0 : index
    %c0_0 = arith.constant 0 : index
    %6 = vector.load %arg2[%c0, %c0_0] : memref<16x128xf32, #tpu.memory_space<vmem>>, vector<16x128xf32>
    %c0_1 = arith.constant 0 : index
    %c0_2 = arith.constant 0 : index
    %7 = vector.load %arg1[%c0_1, %c0_2] : memref<16x128xf32, #tpu.memory_space<vmem>>, vector<16x128xf32>
    %cst = arith.constant 0.000000e+00 : f32
    %8 = vector.shape_cast %5 : vector<1x128xi1> to vector<1x128xi1>
    %9 = vector.broadcast %8 : vector<1x128xi1> to vector<16x128xi1>
    %10 = vector.broadcast %cst : f32 to vector<16x128xf32>
    %11 = arith.select %9, %7, %10 : vector<16x128xi1>, vector<16x128xf32>
    %cst_3 = arith.constant 1.000000e+00 : f32
    %12 = vector.broadcast %cst_3 : f32 to vector<16x128xf32>
    %13 = arith.subf %12, %11 : vector<16x128xf32>
    %cst_4 = arith.constant 0.000000e+00 : f32
    %14 = vector.broadcast %cst_4 : f32 to vector<16x128xf32>
    %15 = vector.extract_strided_slice %6 {offsets = [0, 0], sizes = [1, 128], strides = [1, 1]} : vector<16x128xf32> to vector<1x128xf32>
    %16 = vector.broadcast %15 : vector<1x128xf32> to vector<16x128xf32>
    %17 = arith.cmpf oge, %16, %6 : vector<16x128xf32>
    %18 = vector.extract_strided_slice %13 {offsets = [0, 0], sizes = [1, 128], strides = [1, 1]} : vector<16x128xf32> to vector<1x128xf32>
    %cst_5 = arith.constant 0.000000e+00 : f32
    %19 = vector.shape_cast %18 : vector<1x128xf32> to vector<1x128xf32>
    %20 = vector.broadcast %19 : vector<1x128xf32> to vector<16x128xf32>
    %21 = vector.broadcast %cst_5 : f32 to vector<16x128xf32>
    %22 = arith.select %17, %20, %21 : vector<16x128xi1>, vector<16x128xf32>
    %23 = arith.addf %14, %22 : vector<16x128xf32>
    %24 = vector.extract_strided_slice %6 {offsets = [1, 0], sizes = [1, 128], strides = [1, 1]} : vector<16x128xf32> to vector<1x128xf32>
    %25 = vector.broadcast %24 : vector<1x128xf32> to vector<16x128xf32>
    %26 = arith.cmpf oge, %25, %6 : vector<16x128xf32>
    %27 = vector.extract_strided_slice %13 {offsets = [1, 0], sizes = [1, 128], strides = [1, 1]} : vector<16x128xf32> to vector<1x128xf32>
    %cst_6 = arith.constant 0.000000e+00 : f32
    %28 = vector.shape_cast %27 : vector<1x128xf32> to vector<1x128xf32>
    %29 = vector.broadcast %28 : vector<1x128xf32> to vector<16x128xf32>
    %30 = vector.broadcast %cst_6 : f32 to vector<16x128xf32>
    %31 = arith.select %26, %29, %30 : vector<16x128xi1>, vector<16x128xf32>
    %32 = arith.addf %23, %31 : vector<16x128xf32>
    %33 = vector.extract_strided_slice %6 {offsets = [2, 0], sizes = [1, 128], strides = [1, 1]} : vector<16x128xf32> to vector<1x128xf32>
    %34 = vector.broadcast %33 : vector<1x128xf32> to vector<16x128xf32>
    %35 = arith.cmpf oge, %34, %6 : vector<16x128xf32>
    %36 = vector.extract_strided_slice %13 {offsets = [2, 0], sizes = [1, 128], strides = [1, 1]} : vector<16x128xf32> to vector<1x128xf32>
    %cst_7 = arith.constant 0.000000e+00 : f32
    %37 = vector.shape_cast %36 : vector<1x128xf32> to vector<1x128xf32>
    %38 = vector.broadcast %37 : vector<1x128xf32> to vector<16x128xf32>
    %39 = vector.broadcast %cst_7 : f32 to vector<16x128xf32>
    %40 = arith.select %35, %38, %39 : vector<16x128xi1>, vector<16x128xf32>
    %41 = arith.addf %32, %40 : vector<16x128xf32>
    %42 = vector.extract_strided_slice %6 {offsets = [3, 0], sizes = [1, 128], strides = [1, 1]} : vector<16x128xf32> to vector<1x128xf32>
    %43 = vector.broadcast %42 : vector<1x128xf32> to vector<16x128xf32>
    %44 = arith.cmpf oge, %43, %6 : vector<16x128xf32>
    %45 = vector.extract_strided_slice %13 {offsets = [3, 0], sizes = [1, 128], strides = [1, 1]} : vector<16x128xf32> to vector<1x128xf32>
    %cst_8 = arith.constant 0.000000e+00 : f32
    %46 = vector.shape_cast %45 : vector<1x128xf32> to vector<1x128xf32>
    %47 = vector.broadcast %46 : vector<1x128xf32> to vector<16x128xf32>
    %48 = vector.broadcast %cst_8 : f32 to vector<16x128xf32>
    %49 = arith.select %44, %47, %48 : vector<16x128xi1>, vector<16x128xf32>
    %50 = arith.addf %41, %49 : vector<16x128xf32>
    %51 = vector.extract_strided_slice %6 {offsets = [4, 0], sizes = [1, 128], strides = [1, 1]} : vector<16x128xf32> to vector<1x128xf32>
    %52 = vector.broadcast %51 : vector<1x128xf32> to vector<16x128xf32>
    %53 = arith.cmpf oge, %52, %6 : vector<16x128xf32>
    %54 = vector.extract_strided_slice %13 {offsets = [4, 0], sizes = [1, 128], strides = [1, 1]} : vector<16x128xf32> to vector<1x128xf32>
    %cst_9 = arith.constant 0.000000e+00 : f32
    %55 = vector.shape_cast %54 : vector<1x128xf32> to vector<1x128xf32>
    %56 = vector.broadcast %55 : vector<1x128xf32> to vector<16x128xf32>
    %57 = vector.broadcast %cst_9 : f32 to vector<16x128xf32>
    %58 = arith.select %53, %56, %57 : vector<16x128xi1>, vector<16x128xf32>
    %59 = arith.addf %50, %58 : vector<16x128xf32>
    %60 = vector.extract_strided_slice %6 {offsets = [5, 0], sizes = [1, 128], strides = [1, 1]} : vector<16x128xf32> to vector<1x128xf32>
    %61 = vector.broadcast %60 : vector<1x128xf32> to vector<16x128xf32>
    %62 = arith.cmpf oge, %61, %6 : vector<16x128xf32>
    %63 = vector.extract_strided_slice %13 {offsets = [5, 0], sizes = [1, 128], strides = [1, 1]} : vector<16x128xf32> to vector<1x128xf32>
    %cst_10 = arith.constant 0.000000e+00 : f32
    %64 = vector.shape_cast %63 : vector<1x128xf32> to vector<1x128xf32>
    %65 = vector.broadcast %64 : vector<1x128xf32> to vector<16x128xf32>
    %66 = vector.broadcast %cst_10 : f32 to vector<16x128xf32>
    %67 = arith.select %62, %65, %66 : vector<16x128xi1>, vector<16x128xf32>
    %68 = arith.addf %59, %67 : vector<16x128xf32>
    %69 = vector.extract_strided_slice %6 {offsets = [6, 0], sizes = [1, 128], strides = [1, 1]} : vector<16x128xf32> to vector<1x128xf32>
    %70 = vector.broadcast %69 : vector<1x128xf32> to vector<16x128xf32>
    %71 = arith.cmpf oge, %70, %6 : vector<16x128xf32>
    %72 = vector.extract_strided_slice %13 {offsets = [6, 0], sizes = [1, 128], strides = [1, 1]} : vector<16x128xf32> to vector<1x128xf32>
    %cst_11 = arith.constant 0.000000e+00 : f32
    %73 = vector.shape_cast %72 : vector<1x128xf32> to vector<1x128xf32>
    %74 = vector.broadcast %73 : vector<1x128xf32> to vector<16x128xf32>
    %75 = vector.broadcast %cst_11 : f32 to vector<16x128xf32>
    %76 = arith.select %71, %74, %75 : vector<16x128xi1>, vector<16x128xf32>
    %77 = arith.addf %68, %76 : vector<16x128xf32>
    %78 = vector.extract_strided_slice %6 {offsets = [7, 0], sizes = [1, 128], strides = [1, 1]} : vector<16x128xf32> to vector<1x128xf32>
    %79 = vector.broadcast %78 : vector<1x128xf32> to vector<16x128xf32>
    %80 = arith.cmpf oge, %79, %6 : vector<16x128xf32>
    %81 = vector.extract_strided_slice %13 {offsets = [7, 0], sizes = [1, 128], strides = [1, 1]} : vector<16x128xf32> to vector<1x128xf32>
    %cst_12 = arith.constant 0.000000e+00 : f32
    %82 = vector.shape_cast %81 : vector<1x128xf32> to vector<1x128xf32>
    %83 = vector.broadcast %82 : vector<1x128xf32> to vector<16x128xf32>
    %84 = vector.broadcast %cst_12 : f32 to vector<16x128xf32>
    %85 = arith.select %80, %83, %84 : vector<16x128xi1>, vector<16x128xf32>
    %86 = arith.addf %77, %85 : vector<16x128xf32>
    %87 = vector.extract_strided_slice %6 {offsets = [8, 0], sizes = [1, 128], strides = [1, 1]} : vector<16x128xf32> to vector<1x128xf32>
    %88 = vector.broadcast %87 : vector<1x128xf32> to vector<16x128xf32>
    %89 = arith.cmpf oge, %88, %6 : vector<16x128xf32>
    %90 = vector.extract_strided_slice %13 {offsets = [8, 0], sizes = [1, 128], strides = [1, 1]} : vector<16x128xf32> to vector<1x128xf32>
    %cst_13 = arith.constant 0.000000e+00 : f32
    %91 = vector.shape_cast %90 : vector<1x128xf32> to vector<1x128xf32>
    %92 = vector.broadcast %91 : vector<1x128xf32> to vector<16x128xf32>
    %93 = vector.broadcast %cst_13 : f32 to vector<16x128xf32>
    %94 = arith.select %89, %92, %93 : vector<16x128xi1>, vector<16x128xf32>
    %95 = arith.addf %86, %94 : vector<16x128xf32>
    %96 = vector.extract_strided_slice %6 {offsets = [9, 0], sizes = [1, 128], strides = [1, 1]} : vector<16x128xf32> to vector<1x128xf32>
    %97 = vector.broadcast %96 : vector<1x128xf32> to vector<16x128xf32>
    %98 = arith.cmpf oge, %97, %6 : vector<16x128xf32>
    %99 = vector.extract_strided_slice %13 {offsets = [9, 0], sizes = [1, 128], strides = [1, 1]} : vector<16x128xf32> to vector<1x128xf32>
    %cst_14 = arith.constant 0.000000e+00 : f32
    %100 = vector.shape_cast %99 : vector<1x128xf32> to vector<1x128xf32>
    %101 = vector.broadcast %100 : vector<1x128xf32> to vector<16x128xf32>
    %102 = vector.broadcast %cst_14 : f32 to vector<16x128xf32>
    %103 = arith.select %98, %101, %102 : vector<16x128xi1>, vector<16x128xf32>
    %104 = arith.addf %95, %103 : vector<16x128xf32>
    %105 = vector.extract_strided_slice %6 {offsets = [10, 0], sizes = [1, 128], strides = [1, 1]} : vector<16x128xf32> to vector<1x128xf32>
    %106 = vector.broadcast %105 : vector<1x128xf32> to vector<16x128xf32>
    %107 = arith.cmpf oge, %106, %6 : vector<16x128xf32>
    %108 = vector.extract_strided_slice %13 {offsets = [10, 0], sizes = [1, 128], strides = [1, 1]} : vector<16x128xf32> to vector<1x128xf32>
    %cst_15 = arith.constant 0.000000e+00 : f32
    %109 = vector.shape_cast %108 : vector<1x128xf32> to vector<1x128xf32>
    %110 = vector.broadcast %109 : vector<1x128xf32> to vector<16x128xf32>
    %111 = vector.broadcast %cst_15 : f32 to vector<16x128xf32>
    %112 = arith.select %107, %110, %111 : vector<16x128xi1>, vector<16x128xf32>
    %113 = arith.addf %104, %112 : vector<16x128xf32>
    %114 = vector.extract_strided_slice %6 {offsets = [11, 0], sizes = [1, 128], strides = [1, 1]} : vector<16x128xf32> to vector<1x128xf32>
    %115 = vector.broadcast %114 : vector<1x128xf32> to vector<16x128xf32>
    %116 = arith.cmpf oge, %115, %6 : vector<16x128xf32>
    %117 = vector.extract_strided_slice %13 {offsets = [11, 0], sizes = [1, 128], strides = [1, 1]} : vector<16x128xf32> to vector<1x128xf32>
    %cst_16 = arith.constant 0.000000e+00 : f32
    %118 = vector.shape_cast %117 : vector<1x128xf32> to vector<1x128xf32>
    %119 = vector.broadcast %118 : vector<1x128xf32> to vector<16x128xf32>
    %120 = vector.broadcast %cst_16 : f32 to vector<16x128xf32>
    %121 = arith.select %116, %119, %120 : vector<16x128xi1>, vector<16x128xf32>
    %122 = arith.addf %113, %121 : vector<16x128xf32>
    %123 = vector.extract_strided_slice %6 {offsets = [12, 0], sizes = [1, 128], strides = [1, 1]} : vector<16x128xf32> to vector<1x128xf32>
    %124 = vector.broadcast %123 : vector<1x128xf32> to vector<16x128xf32>
    %125 = arith.cmpf oge, %124, %6 : vector<16x128xf32>
    %126 = vector.extract_strided_slice %13 {offsets = [12, 0], sizes = [1, 128], strides = [1, 1]} : vector<16x128xf32> to vector<1x128xf32>
    %cst_17 = arith.constant 0.000000e+00 : f32
    %127 = vector.shape_cast %126 : vector<1x128xf32> to vector<1x128xf32>
    %128 = vector.broadcast %127 : vector<1x128xf32> to vector<16x128xf32>
    %129 = vector.broadcast %cst_17 : f32 to vector<16x128xf32>
    %130 = arith.select %125, %128, %129 : vector<16x128xi1>, vector<16x128xf32>
    %131 = arith.addf %122, %130 : vector<16x128xf32>
    %132 = vector.extract_strided_slice %6 {offsets = [13, 0], sizes = [1, 128], strides = [1, 1]} : vector<16x128xf32> to vector<1x128xf32>
    %133 = vector.broadcast %132 : vector<1x128xf32> to vector<16x128xf32>
    %134 = arith.cmpf oge, %133, %6 : vector<16x128xf32>
    %135 = vector.extract_strided_slice %13 {offsets = [13, 0], sizes = [1, 128], strides = [1, 1]} : vector<16x128xf32> to vector<1x128xf32>
    %cst_18 = arith.constant 0.000000e+00 : f32
    %136 = vector.shape_cast %135 : vector<1x128xf32> to vector<1x128xf32>
    %137 = vector.broadcast %136 : vector<1x128xf32> to vector<16x128xf32>
    %138 = vector.broadcast %cst_18 : f32 to vector<16x128xf32>
    %139 = arith.select %134, %137, %138 : vector<16x128xi1>, vector<16x128xf32>
    %140 = arith.addf %131, %139 : vector<16x128xf32>
    %141 = vector.extract_strided_slice %6 {offsets = [14, 0], sizes = [1, 128], strides = [1, 1]} : vector<16x128xf32> to vector<1x128xf32>
    %142 = vector.broadcast %141 : vector<1x128xf32> to vector<16x128xf32>
    %143 = arith.cmpf oge, %142, %6 : vector<16x128xf32>
    %144 = vector.extract_strided_slice %13 {offsets = [14, 0], sizes = [1, 128], strides = [1, 1]} : vector<16x128xf32> to vector<1x128xf32>
    %cst_19 = arith.constant 0.000000e+00 : f32
    %145 = vector.shape_cast %144 : vector<1x128xf32> to vector<1x128xf32>
    %146 = vector.broadcast %145 : vector<1x128xf32> to vector<16x128xf32>
    %147 = vector.broadcast %cst_19 : f32 to vector<16x128xf32>
    %148 = arith.select %143, %146, %147 : vector<16x128xi1>, vector<16x128xf32>
    %149 = arith.addf %140, %148 : vector<16x128xf32>
    %150 = vector.extract_strided_slice %6 {offsets = [15, 0], sizes = [1, 128], strides = [1, 1]} : vector<16x128xf32> to vector<1x128xf32>
    %151 = vector.broadcast %150 : vector<1x128xf32> to vector<16x128xf32>
    %152 = arith.cmpf oge, %151, %6 : vector<16x128xf32>
    %153 = vector.extract_strided_slice %13 {offsets = [15, 0], sizes = [1, 128], strides = [1, 1]} : vector<16x128xf32> to vector<1x128xf32>
    %cst_20 = arith.constant 0.000000e+00 : f32
    %154 = vector.shape_cast %153 : vector<1x128xf32> to vector<1x128xf32>
    %155 = vector.broadcast %154 : vector<1x128xf32> to vector<16x128xf32>
    %156 = vector.broadcast %cst_20 : f32 to vector<16x128xf32>
    %157 = arith.select %152, %155, %156 : vector<16x128xi1>, vector<16x128xf32>
    %158 = arith.addf %149, %157 : vector<16x128xf32>
    %159 = arith.mulf %11, %158 : vector<16x128xf32>
    %cst_21 = arith.constant dense<0.000000e+00> : vector<128xf32>
    %160 = vector.multi_reduction <add>, %159, %cst_21 [0] : vector<16x128xf32> to vector<128xf32>
    %161 = vector.shape_cast %160 : vector<128xf32> to vector<1x128xf32>
    %cst_22 = arith.constant dense<0.000000e+00> : vector<128xf32>
    %162 = vector.multi_reduction <add>, %11, %cst_22 [0] : vector<16x128xf32> to vector<128xf32>
    %163 = vector.shape_cast %162 : vector<128xf32> to vector<1x128xf32>
    %cst_23 = arith.constant 1.600000e+01 : f32
    %164 = vector.broadcast %cst_23 : f32 to vector<1x128xf32>
    %165 = arith.subf %164, %163 : vector<1x128xf32>
    %166 = arith.mulf %163, %165 : vector<1x128xf32>
    %cst_24 = arith.constant 0.000000e+00 : f32
    %167 = vector.broadcast %cst_24 : f32 to vector<1x128xf32>
    %168 = arith.cmpf ogt, %166, %167 : vector<1x128xf32>
    %cst_25 = arith.constant 1.000000e+00 : f32
    %169 = vector.broadcast %cst_25 : f32 to vector<1x128xf32>
    %170 = arith.select %168, %166, %169 : vector<1x128xi1>, vector<1x128xf32>
    %cst_26 = arith.constant 0.000000e+00 : f32
    %171 = vector.broadcast %cst_26 : f32 to vector<1x128xf32>
    %172 = arith.cmpf ogt, %166, %171 : vector<1x128xf32>
    %173 = arith.divf %161, %170 : vector<1x128xf32>
    %cst_27 = arith.constant 0.000000e+00 : f32
    %174 = vector.broadcast %cst_27 : f32 to vector<1x128xf32>
    %175 = arith.select %172, %173, %174 : vector<1x128xi1>, vector<1x128xf32>
    %176 = vector.shape_cast %175 : vector<1x128xf32> to vector<1x1x128xf32>
    %c0_28 = arith.constant 0 : index
    %c0_29 = arith.constant 0 : index
    %c0_30 = arith.constant 0 : index
    %177 = vector.load %arg3[%c0_28, %c0_29, %c0_30] : memref<1x1x128xf32, #tpu.memory_space<vmem>>, vector<1x1x128xf32>
    tpu.vector_store %arg3[%c0_28, %c0_29, %c0_30], %176 {strides = array<i32>} : memref<1x1x128xf32, #tpu.memory_space<vmem>>, vector<1x1x128xf32>,
    return
  }
  func.func @transform_0(%arg0: i32) -> (i32, i32) {
    %c0_i32 = arith.constant 0 : i32
    %c0_i32_0 = arith.constant 0 : i32
    return %c0_i32, %arg0 : i32, i32
  }
  func.func @transform_1(%arg0: i32) -> (i32, i32) {
    %c0_i32 = arith.constant 0 : i32
    %c0_i32_0 = arith.constant 0 : i32
    return %c0_i32, %arg0 : i32, i32
  }
  func.func @transform_2(%arg0: i32) -> (i32, i32, i32) {
    %c0_i32 = arith.constant 0 : i32
    %c0_i32_0 = arith.constant 0 : i32
    %c0_i32_1 = arith.constant 0 : i32
    return %arg0, %c0_i32, %c0_i32_0 : i32, i32, i32
  }
}

</mosaic_0001>

<llo_original>
// kernel: tpu_custom_call.1
$region0: #{tpu_custom_call.1}
  #allocation0 [shape = 'u32[]', space=smem, size = 0x4, offset = 0x4, fixed_abs, tag = 'smem constant byte address 0x4 - core index']
  #allocation1 [shape = 'u32[144,128]{1,0:T(1,128)}', space=vmem, size = 0x12000, scoped, tag = 'internal scratch']
  %s0 = inlined_call_operand.hbm [shape: f32[16,300], index: 0, kind: input, shape index: {}]
  %s1 = inlined_call_operand.hbm [shape: f32[16,300], index: 1, kind: input, shape index: {}]
  %s2 = inlined_call_operand.hbm [shape: f32[3,1,128], index: 2, kind: output, shape index: {}]
  %s3 = sld [smem:[#allocation0]]
  $region49: #{tpu_custom_call.1} parent=0
    _
  %s5 = ssub.s32 1, %s3
  %s6 = scalar_select 0, %s5, %s3
  $region1: #{tpu_custom_call.1} parent=0
    #allocation2 [shape = 'u8[16384]{0}', space=vmem, size = 0x4000, scoped, tag = 'input window, operand 0']
    #allocation3 [shape = 's32[2]{0}', space=sflag, size = 0x8, scoped, tag = 'scoped memory for tpu_custom_call.1']
    #allocation4 [shape = 's32[2]{0}', space=sflag, size = 0x8, scoped, tag = 'scoped memory for tpu_custom_call.1']
    #allocation5 [shape = 'u8[16384]{0}', space=vmem, size = 0x4000, scoped, tag = 'input window, operand 1']
    #allocation6 [shape = 's32[2]{0}', space=sflag, size = 0x8, scoped, tag = 'scoped memory for tpu_custom_call.1']
    #allocation7 [shape = 'u8[1024]{0}', space=vmem, size = 0x400, scoped, tag = 'output window, operand 0']
    %7 = vsyncpa [#allocation3], 0
    %s8 = scalar_lea.sflag [#allocation3], 1
    %9 = vsyncpa %s8, 0
    %10 = vsyncpa [#allocation6], 0
    %s11 = scalar_lea.sflag [#allocation6], 1
    %12 = vsyncpa %s11, 0
    %13 = vsyncpa [#allocation4], 0
    %s14 = scalar_lea.sflag [#allocation4], 1
    %15 = vsyncpa %s14, 0
    loop: start=0, step=1, limit=5
    $region2: #{tpu_custom_call.1} parent=1 // loop_pre_header
      _
    $region3: #{tpu_custom_call.1} parent=1 // loop_header
      %s17 = sphi 0, %s21
      %p18 = scmp.ge.s32.totalorder %s17, 5
      %s27 = sphi 0, %s29
      %s30 = sphi 0, %s27
      %s31 = sphi 0, %s30
      %s47 = sphi 0, %s31
      %s53 = sphi 0, %s55
      %s56 = sphi 0, %s53
      %s57 = sphi 0, %s56
      %s73 = sphi 0, %s57
      %s79 = sphi 0, %s81
      %s82 = sphi 0, %s79
      %s83 = sphi 0, %s82
      %s99 = sphi 0, %s83
    $region4: #{tpu_custom_call.1} parent=1 // loop_header_branch
      %20 = sbr.rel (%p18) target = $region8
    $region5: #{tpu_custom_call.1} parent=1 // loop_body
      %s22 = ssub.s32 %s17, 1
      %s23 = ssub.s32 %s17, 2
      %s24 = sadd.s32 %s17, 1
      %s25 = ssub.s32 %s17, %s24
      %p26 = scmp.eq.s32.totalorder %s25, 0
      %s28 = sadd.s32 %s27, 1
      %s29 = scalar_select %p26, %s27, %s28
      %p32 = pneg %p26
      %p33 = scmp.eq.s32.totalorder %s17, 2
      %p34 = por %p32, %p33
      %p35 = scmp.ne.s32.totalorder %s27, %s30
      %p36 = scmp.eq.s32.totalorder %s17, 0
      %p37 = por %p35, %p36
      %p38 = scmp.ne.s32.totalorder %s27, %s30
      %p39 = scmp.eq.s32.totalorder %s22, 2
      %p40 = por %p38, %p39
      %p41 = scmp.ne.s32.totalorder %s30, %s31
      %p42 = scmp.eq.s32.totalorder %s22, 0
      %p43 = por %p41, %p42
      %p44 = scmp.ne.s32.totalorder %s30, %s31
      %p45 = scmp.eq.s32.totalorder %s23, 2
      %p46 = por %p44, %p45
      %p48 = scmp.ne.s32.totalorder %s31, %s47
      %p49 = scmp.eq.s32.totalorder %s23, 0
      %p50 = por %p48, %p49
      %s51 = ssub.s32 %s17, %s24
      %p52 = scmp.eq.s32.totalorder %s51, 0
      %s54 = sadd.s32 %s53, 1
      %s55 = scalar_select %p52, %s53, %s54
      %p58 = pneg %p52
      %p59 = scmp.eq.s32.totalorder %s17, 2
      %p60 = por %p58, %p59
      %p61 = scmp.ne.s32.totalorder %s53, %s56
      %p62 = scmp.eq.s32.totalorder %s17, 0
      %p63 = por %p61, %p62
      %p64 = scmp.ne.s32.totalorder %s53, %s56
      %p65 = scmp.eq.s32.totalorder %s22, 2
      %p66 = por %p64, %p65
      %p67 = scmp.ne.s32.totalorder %s56, %s57
      %p68 = scmp.eq.s32.totalorder %s22, 0
      %p69 = por %p67, %p68
      %p70 = scmp.ne.s32.totalorder %s56, %s57
      %p71 = scmp.eq.s32.totalorder %s23, 2
      %p72 = por %p70, %p71
      %p74 = scmp.ne.s32.totalorder %s57, %s73
      %p75 = scmp.eq.s32.totalorder %s23, 0
      %p76 = por %p74, %p75
      %s77 = ssub.s32 %s17, %s24
      %p78 = scmp.eq.s32.totalorder %s77, 0
      %s80 = sadd.s32 %s79, 1
      %s81 = scalar_select %p78, %s79, %s80
      %p84 = pneg %p78
      %p85 = scmp.eq.s32.totalorder %s17, 2
      %p86 = por %p84, %p85
      %p87 = scmp.ne.s32.totalorder %s79, %s82
      %p88 = scmp.eq.s32.totalorder %s17, 0
      %p89 = por %p87, %p88
      %p90 = scmp.ne.s32.totalorder %s79, %s82
      %p91 = scmp.eq.s32.totalorder %s22, 2
      %p92 = por %p90, %p91
      %p93 = scmp.ne.s32.totalorder %s82, %s83
      %p94 = scmp.eq.s32.totalorder %s22, 0
      %p95 = por %p93, %p94
      %p96 = scmp.ne.s32.totalorder %s82, %s83
      %p97 = scmp.eq.s32.totalorder %s23, 2
      %p98 = por %p96, %p97
      %p100 = scmp.ne.s32.totalorder %s83, %s99
      %p101 = scmp.eq.s32.totalorder %s23, 0
      %p102 = por %p100, %p101
      %p103 = scmp.le.s32.totalorder 1, %s17
      %p104 = scmp.lt.s32.totalorder %s17, 4
      %p105 = pnand %p103, %p104
      %p106 = pneg %p105
      // Predicated region
      $region9: #{tpu_custom_call.1} parent=5 // pred_check
        _
      $region10: #{tpu_custom_call.1} parent=5 // pred_check_branch
        %108 = sbr.rel (%p105) target = $region12
      $region11: #{tpu_custom_call.1} parent=5 // pred_region
        %s109 = ssub.s32 %s17, 1
      $region12: #{tpu_custom_call.1} parent=5 // pred_fallthru
        _
      %p110 = scmp.lt.s32.totalorder %s17, 3
      // Predicated region
      $region13: #{tpu_custom_call.1} parent=5 // pred_check
        %p111 = pneg %p110
      $region14: #{tpu_custom_call.1} parent=5 // pred_check_branch
        %113 = sbr.rel (%p111) target = $region16
      $region15: #{tpu_custom_call.1} parent=5 // pred_region
        // Predicated region
        $region17: #{tpu_custom_call.1} parent=15 // pred_check
          %p114 = pneg %p37
        $region18: #{tpu_custom_call.1} parent=15 // pred_check_branch
          %116 = sbr.rel (%p114) target = $region20
        $region19: #{tpu_custom_call.1} parent=15 // pred_region
          %s117 = sand.u32 %s27, 1
          %s118 = scalar_lea.sflag [#allocation3], %s117
          %s119 = sand.u32 %s27, 1
          %s120 = smul.addr %s119, 16
          %s121 = scalar_lea.vmem [#allocation2], %s120
          %s123 = ssub.s32 256, 256
          %124 = vsyncadd %s118, %s123
          %s125 = smul.addr %s17, 128
          %s126 = scalar_lea.hbm %s0, %s125
          %s127 = sshll.u32 %s121, 4
          %s128 = int_to_ptr.vmem [resolvable:$true] %s127
          %133 = dma.hbm_to_vmem [thread:$0]  %s126, 256, %s128, %s118, 384, 128, 8
        $region20: #{tpu_custom_call.1} parent=15 // pred_fallthru
          _
        // Predicated region
        $region21: #{tpu_custom_call.1} parent=15 // pred_check
          %p134 = pneg %p63
        $region22: #{tpu_custom_call.1} parent=15 // pred_check_branch
          %136 = sbr.rel (%p134) target = $region24
        $region23: #{tpu_custom_call.1} parent=15 // pred_region
          %s137 = sand.u32 %s53, 1
          %s138 = scalar_lea.sflag [#allocation6], %s137
          %s139 = sand.u32 %s53, 1
          %s140 = smul.addr %s139, 16
          %s141 = scalar_lea.vmem [#allocation5], %s140
          %s143 = ssub.s32 256, 256
          %144 = vsyncadd %s138, %s143
          %s145 = smul.addr %s17, 128
          %s146 = scalar_lea.hbm %s1, %s145
          %s147 = sshll.u32 %s141, 4
          %s148 = int_to_ptr.vmem [resolvable:$true] %s147
          %153 = dma.hbm_to_vmem [thread:$0]  %s146, 256, %s148, %s138, 384, 128, 8
        $region24: #{tpu_custom_call.1} parent=15 // pred_fallthru
          _
      $region16: #{tpu_custom_call.1} parent=5 // pred_fallthru
        _
      %p154 = scmp.le.s32.totalorder 1, %s17
      %p155 = scmp.lt.s32.totalorder %s17, 4
      %p156 = pnand %p154, %p155
      %p157 = pneg %p156
      // Predicated region
      $region25: #{tpu_custom_call.1} parent=5 // pred_check
        _
      $region26: #{tpu_custom_call.1} parent=5 // pred_check_branch
        %159 = sbr.rel (%p156) target = $region28
      $region27: #{tpu_custom_call.1} parent=5 // pred_region
        %s160 = ssub.s32 %s17, 1
        %s161 = sand.u32 %s30, 1
        %s162 = scalar_lea.sflag [#allocation3], %s161
        %s163 = sand.u32 %s30, 1
        %s164 = smul.addr %s163, 16
        %s165 = scalar_lea.vmem [#allocation2], %s164
        // Predicated region
        $region29: #{tpu_custom_call.1} parent=27 // pred_check
          %p166 = pneg %p43
        $region30: #{tpu_custom_call.1} parent=27 // pred_check_branch
          %168 = sbr.rel (%p166) target = $region32
        $region31: #{tpu_custom_call.1} parent=27 // pred_region
          %169 = dma.done %s162, 256
        $region32: #{tpu_custom_call.1} parent=27 // pred_fallthru
          _
        %s170 = sand.u32 %s56, 1
        %s171 = scalar_lea.sflag [#allocation6], %s170
        %s172 = sand.u32 %s56, 1
        %s173 = smul.addr %s172, 16
        %s174 = scalar_lea.vmem [#allocation5], %s173
        // Predicated region
        $region33: #{tpu_custom_call.1} parent=27 // pred_check
          %p175 = pneg %p69
        $region34: #{tpu_custom_call.1} parent=27 // pred_check_branch
          %177 = sbr.rel (%p175) target = $region36
        $region35: #{tpu_custom_call.1} parent=27 // pred_region
          %178 = dma.done %s171, 256
        $region36: #{tpu_custom_call.1} parent=27 // pred_fallthru
          _
        %s179 = sand.u32 %s30, 1
        %s180 = scalar_lea.sflag [#allocation3], %s179
        %s181 = sand.u32 %s30, 1
        %s182 = smul.addr %s181, 16
        %s183 = scalar_lea.vmem [#allocation2], %s182
        %p184 = pneg %p43
        %p185 = pneg %p40
        %s186 = sand.u32 %s56, 1
        %s187 = scalar_lea.sflag [#allocation6], %s186
        %s188 = sand.u32 %s56, 1
        %s189 = smul.addr %s188, 16
        %s190 = scalar_lea.vmem [#allocation5], %s189
        %p191 = pneg %p69
        %p192 = pneg %p66
        %p193 = pneg %p95
        %p194 = pneg %p92
        %s195 = sand.u32 %s82, 1
        %s196 = scalar_lea.sflag [#allocation4], %s195
        %s197 = sand.u32 %s82, 1
        %s198 = scalar_lea.vmem [#allocation7], %s197
        %s199 = smul.u32 %s22, 128
        %v200 = vlaneseq
        %v201 = vand.u32 %v200, 127
        %v202 = vstv %s199
        %v203 = vadd.s32 %v202, %v201
        %vm204 = vcmp.lt.s32.totalorder %v203, 300
        %v205 = vld [vmem:[%s174] sm:$0xff]
        %v206 = vld [vmem:[%s174 + $0x8] sm:$0xff]
        %v207 = vld [vmem:[%s165] sm:$0xff]
        %v208 = vld [vmem:[%s165 + $0x8] sm:$0xff]
        %v209 = vsel %vm204, 1, 0
        %vm210 = vcmp.eq.s32.totalorder %v209, 1
        %v211 = vsel %vm210, %v207, 0.0
        %v212 = vsel %vm210, %v208, 0.0
        %v213 = vsub.f32 1.0, %v211
        %v214 = vsub.f32 1.0, %v212
        %v215 = vlaneseq
        %v216 = vshrl.u32 %v215, 7
        %v217 = vsub.s32 0, %v216
        %v218 = vrot.slane %v205, %v217
        %vm219 = vcmp.ge.f32.partialorder %v218, %v205
        %vm220 = vcmp.ge.f32.partialorder %v218, %v206
        %v221 = vlaneseq
        %v222 = vshrl.u32 %v221, 7
        %v223 = vsub.s32 0, %v222
        %v224 = vrot.slane %v213, %v223
        %v225 = vsel %vm219, %v224, 0.0
        %v226 = vsel %vm220, %v224, 0.0
        %v227 = vadd.f32 %v225, 0.0
        %v228 = vadd.f32 %v226, 0.0
        %v229 = vlaneseq
        %v230 = vshrl.u32 %v229, 7
        %v231 = vsub.s32 1, %v230
        %v232 = vrot.slane %v205, %v231
        %vm233 = vcmp.ge.f32.partialorder %v232, %v205
        %vm234 = vcmp.ge.f32.partialorder %v232, %v206
        %v235 = vlaneseq
        %v236 = vshrl.u32 %v235, 7
        %v237 = vsub.s32 1, %v236
        %v238 = vrot.slane %v213, %v237
        %v239 = vsel %vm233, %v238, 0.0
        %v240 = vsel %vm234, %v238, 0.0
        %v241 = vadd.f32 %v227, %v239
        %v242 = vadd.f32 %v228, %v240
        %v243 = vlaneseq
        %v244 = vshrl.u32 %v243, 7
        %v245 = vsub.s32 2, %v244
        %v246 = vrot.slane %v205, %v245
        %vm247 = vcmp.ge.f32.partialorder %v246, %v205
        %vm248 = vcmp.ge.f32.partialorder %v246, %v206
        %v249 = vlaneseq
        %v250 = vshrl.u32 %v249, 7
        %v251 = vsub.s32 2, %v250
        %v252 = vrot.slane %v213, %v251
        %v253 = vsel %vm247, %v252, 0.0
        %v254 = vsel %vm248, %v252, 0.0
        %v255 = vadd.f32 %v241, %v253
        %v256 = vadd.f32 %v242, %v254
        %v257 = vlaneseq
        %v258 = vshrl.u32 %v257, 7
        %v259 = vsub.s32 3, %v258
        %v260 = vrot.slane %v205, %v259
        %vm261 = vcmp.ge.f32.partialorder %v260, %v205
        %vm262 = vcmp.ge.f32.partialorder %v260, %v206
        %v263 = vlaneseq
        %v264 = vshrl.u32 %v263, 7
        %v265 = vsub.s32 3, %v264
        %v266 = vrot.slane %v213, %v265
        %v267 = vsel %vm261, %v266, 0.0
        %v268 = vsel %vm262, %v266, 0.0
        %v269 = vadd.f32 %v255, %v267
        %v270 = vadd.f32 %v256, %v268
        %v271 = vlaneseq
        %v272 = vshrl.u32 %v271, 7
        %v273 = vsub.s32 4, %v272
        %v274 = vrot.slane %v205, %v273
        %vm275 = vcmp.ge.f32.partialorder %v274, %v205
        %vm276 = vcmp.ge.f32.partialorder %v274, %v206
        %v277 = vlaneseq
        %v278 = vshrl.u32 %v277, 7
        %v279 = vsub.s32 4, %v278
        %v280 = vrot.slane %v213, %v279
        %v281 = vsel %vm275, %v280, 0.0
        %v282 = vsel %vm276, %v280, 0.0
        %v283 = vadd.f32 %v269, %v281
        %v284 = vadd.f32 %v270, %v282
        %v285 = vlaneseq
        %v286 = vshrl.u32 %v285, 7
        %v287 = vsub.s32 5, %v286
        %v288 = vrot.slane %v205, %v287
        %vm289 = vcmp.ge.f32.partialorder %v288, %v205
        %vm290 = vcmp.ge.f32.partialorder %v288, %v206
        %v291 = vlaneseq
        %v292 = vshrl.u32 %v291, 7
        %v293 = vsub.s32 5, %v292
        %v294 = vrot.slane %v213, %v293
        %v295 = vsel %vm289, %v294, 0.0
        %v296 = vsel %vm290, %v294, 0.0
        %v297 = vadd.f32 %v283, %v295
        %v298 = vadd.f32 %v284, %v296
        %v299 = vlaneseq
        %v300 = vshrl.u32 %v299, 7
        %v301 = vsub.s32 6, %v300
        %v302 = vrot.slane %v205, %v301
        %vm303 = vcmp.ge.f32.partialorder %v302, %v205
        %vm304 = vcmp.ge.f32.partialorder %v302, %v206
        %v305 = vlaneseq
        %v306 = vshrl.u32 %v305, 7
        %v307 = vsub.s32 6, %v306
        %v308 = vrot.slane %v213, %v307
        %v309 = vsel %vm303, %v308, 0.0
        %v310 = vsel %vm304, %v308, 0.0
        %v311 = vadd.f32 %v297, %v309
        %v312 = vadd.f32 %v298, %v310
        %v313 = vlaneseq
        %v314 = vshrl.u32 %v313, 7
        %v315 = vsub.s32 7, %v314
        %v316 = vrot.slane %v205, %v315
        %vm317 = vcmp.ge.f32.partialorder %v316, %v205
        %vm318 = vcmp.ge.f32.partialorder %v316, %v206
        %v319 = vlaneseq
        %v320 = vshrl.u32 %v319, 7
        %v321 = vsub.s32 7, %v320
        %v322 = vrot.slane %v213, %v321
        %v323 = vsel %vm317, %v322, 0.0
        %v324 = vsel %vm318, %v322, 0.0
        %v325 = vadd.f32 %v311, %v323
        %v326 = vadd.f32 %v312, %v324
        %v327 = vlaneseq
        %v328 = vshrl.u32 %v327, 7
        %v329 = vsub.s32 0, %v328
        %v330 = vrot.slane %v206, %v329
        %vm331 = vcmp.ge.f32.partialorder %v330, %v205
        %vm332 = vcmp.ge.f32.partialorder %v330, %v206
        %v333 = vlaneseq
        %v334 = vshrl.u32 %v333, 7
        %v335 = vsub.s32 0, %v334
        %v336 = vrot.slane %v214, %v335
        %v337 = vsel %vm331, %v336, 0.0
        %v338 = vsel %vm332, %v336, 0.0
        %v339 = vadd.f32 %v325, %v337
        %v340 = vadd.f32 %v326, %v338
        %v341 = vlaneseq
        %v342 = vshrl.u32 %v341, 7
        %v343 = vsub.s32 1, %v342
        %v344 = vrot.slane %v206, %v343
        %vm345 = vcmp.ge.f32.partialorder %v344, %v205
        %vm346 = vcmp.ge.f32.partialorder %v344, %v206
        %v347 = vlaneseq
        %v348 = vshrl.u32 %v347, 7
        %v349 = vsub.s32 1, %v348
        %v350 = vrot.slane %v214, %v349
        %v351 = vsel %vm345, %v350, 0.0
        %v352 = vsel %vm346, %v350, 0.0
        %v353 = vadd.f32 %v339, %v351
        %v354 = vadd.f32 %v340, %v352
        %v355 = vlaneseq
        %v356 = vshrl.u32 %v355, 7
        %v357 = vsub.s32 2, %v356
        %v358 = vrot.slane %v206, %v357
        %vm359 = vcmp.ge.f32.partialorder %v358, %v205
        %vm360 = vcmp.ge.f32.partialorder %v358, %v206
        %v361 = vlaneseq
        %v362 = vshrl.u32 %v361, 7
        %v363 = vsub.s32 2, %v362
        %v364 = vrot.slane %v214, %v363
        %v365 = vsel %vm359, %v364, 0.0
        %v366 = vsel %vm360, %v364, 0.0
        %v367 = vadd.f32 %v353, %v365
        %v368 = vadd.f32 %v354, %v366
        %v369 = vlaneseq
        %v370 = vshrl.u32 %v369, 7
        %v371 = vsub.s32 3, %v370
        %v372 = vrot.slane %v206, %v371
        %vm373 = vcmp.ge.f32.partialorder %v372, %v205
        %vm374 = vcmp.ge.f32.partialorder %v372, %v206
        %v375 = vlaneseq
        %v376 = vshrl.u32 %v375, 7
        %v377 = vsub.s32 3, %v376
        %v378 = vrot.slane %v214, %v377
        %v379 = vsel %vm373, %v378, 0.0
        %v380 = vsel %vm374, %v378, 0.0
        %v381 = vadd.f32 %v367, %v379
        %v382 = vadd.f32 %v368, %v380
        %v383 = vlaneseq
        %v384 = vshrl.u32 %v383, 7
        %v385 = vsub.s32 4, %v384
        %v386 = vrot.slane %v206, %v385
        %vm387 = vcmp.ge.f32.partialorder %v386, %v205
        %vm388 = vcmp.ge.f32.partialorder %v386, %v206
        %v389 = vlaneseq
        %v390 = vshrl.u32 %v389, 7
        %v391 = vsub.s32 4, %v390
        %v392 = vrot.slane %v214, %v391
        %v393 = vsel %vm387, %v392, 0.0
        %v394 = vsel %vm388, %v392, 0.0
        %v395 = vadd.f32 %v381, %v393
        %v396 = vadd.f32 %v382, %v394
        %v397 = vlaneseq
        %v398 = vshrl.u32 %v397, 7
        %v399 = vsub.s32 5, %v398
        %v400 = vrot.slane %v206, %v399
        %vm401 = vcmp.ge.f32.partialorder %v400, %v205
        %vm402 = vcmp.ge.f32.partialorder %v400, %v206
        %v403 = vlaneseq
        %v404 = vshrl.u32 %v403, 7
        %v405 = vsub.s32 5, %v404
        %v406 = vrot.slane %v214, %v405
        %v407 = vsel %vm401, %v406, 0.0
        %v408 = vsel %vm402, %v406, 0.0
        %v409 = vadd.f32 %v395, %v407
        %v410 = vadd.f32 %v396, %v408
        %v411 = vlaneseq
        %v412 = vshrl.u32 %v411, 7
        %v413 = vsub.s32 6, %v412
        %v414 = vrot.slane %v206, %v413
        %vm415 = vcmp.ge.f32.partialorder %v414, %v205
        %vm416 = vcmp.ge.f32.partialorder %v414, %v206
        %v417 = vlaneseq
        %v418 = vshrl.u32 %v417, 7
        %v419 = vsub.s32 6, %v418
        %v420 = vrot.slane %v214, %v419
        %v421 = vsel %vm415, %v420, 0.0
        %v422 = vsel %vm416, %v420, 0.0
        %v423 = vadd.f32 %v409, %v421
        %v424 = vadd.f32 %v410, %v422
        %v425 = vlaneseq
        %v426 = vshrl.u32 %v425, 7
        %v427 = vsub.s32 7, %v426
        %v428 = vrot.slane %v206, %v427
        %vm429 = vcmp.ge.f32.partialorder %v428, %v205
        %vm430 = vcmp.ge.f32.partialorder %v428, %v206
        %v431 = vlaneseq
        %v432 = vshrl.u32 %v431, 7
        %v433 = vsub.s32 7, %v432
        %v434 = vrot.slane %v214, %v433
        %v435 = vsel %vm429, %v434, 0.0
        %v436 = vsel %vm430, %v434, 0.0
        %v437 = vadd.f32 %v423, %v435
        %v438 = vadd.f32 %v424, %v436
        %v439 = vmul.f32 %v211, %v437
        %v440 = vmul.f32 %v212, %v438
        %v441 = vadd.f32 %v439, %v440
        %v442 = vrot.slane %v441, 4
        %v443 = vadd.f32 %v441, %v442
        %v444 = vrot.slane %v443, 2
        %v445 = vadd.f32 %v443, %v444
        %v446 = vrot.slane %v445, 1
        %v447 = vadd.f32 %v445, %v446
        %v448 = vadd.f32 %v211, %v212
        %v449 = vrot.slane %v448, 4
        %v450 = vadd.f32 %v448, %v449
        %v451 = vrot.slane %v450, 2
        %v452 = vadd.f32 %v450, %v451
        %v453 = vrot.slane %v452, 1
        %v454 = vadd.f32 %v452, %v453
        %v455 = vsub.f32 16.0, %v454
        %v456 = vmul.f32 %v454, %v455
        %vm457 = vcmp.gt.f32.partialorder %v456, 0.0
        %v458 = vsel %vm457, %v456, 1.0
        %v459 = vrcp.pop %v458
        %v460 = vmul.f32 %v447, %v459
        %v461 = vsel %vm457, %v460, 0.0
        %462 = vst [vmem:[%s198] sm:$0x1] %v461
        %s463 = sand.u32 %s82, 1
        %s464 = scalar_lea.sflag [#allocation4], %s463
        %s465 = sand.u32 %s82, 1
        %s466 = scalar_lea.vmem [#allocation7], %s465
        // Predicated region
        $region37: #{tpu_custom_call.1} parent=27 // pred_check
          %p467 = pneg %p92
        $region38: #{tpu_custom_call.1} parent=27 // pred_check_branch
          %469 = sbr.rel (%p467) target = $region40
        $region39: #{tpu_custom_call.1} parent=27 // pred_region
          %s471 = ssub.s32 16, 16
          %472 = vsyncadd %s464, %s471
          %s473 = smul.addr %s22, 16
          %s474 = scalar_lea.hbm %s2, %s473
          %s476 = sshll.u32 %s466, 4
          %s477 = int_to_ptr.vmem [resolvable:$true] %s476
          %479 = dma.vmem_to_hbm [thread:$0]  %s477, 16, %s474, %s464
        $region40: #{tpu_custom_call.1} parent=27 // pred_fallthru
          _
      $region28: #{tpu_custom_call.1} parent=5 // pred_fallthru
        _
      %p480 = scmp.le.s32.totalorder 2, %s17
      // Predicated region
      $region41: #{tpu_custom_call.1} parent=5 // pred_check
        %p481 = pneg %p480
      $region42: #{tpu_custom_call.1} parent=5 // pred_check_branch
        %483 = sbr.rel (%p481) target = $region44
      $region43: #{tpu_custom_call.1} parent=5 // pred_region
        %s484 = ssub.s32 %s17, 2
        // Predicated region
        $region45: #{tpu_custom_call.1} parent=43 // pred_check
          %p485 = pneg %p98
        $region46: #{tpu_custom_call.1} parent=43 // pred_check_branch
          %487 = sbr.rel (%p485) target = $region48
        $region47: #{tpu_custom_call.1} parent=43 // pred_region
          %s488 = sand.u32 %s83, 1
          %s489 = scalar_lea.sflag [#allocation4], %s488
          %s490 = sand.u32 %s83, 1
          %s491 = scalar_lea.vmem [#allocation7], %s490
          %492 = dma.done %s489, 16
        $region48: #{tpu_custom_call.1} parent=43 // pred_fallthru
          _
      $region44: #{tpu_custom_call.1} parent=5 // pred_fallthru
        _
    $region6: #{tpu_custom_call.1} parent=1 // loop_footer
      %s21 = sadd.s32 1, %s17
    $region7: #{tpu_custom_call.1} parent=1 // loop_footer_branch
      %16 = sbr.rel target = $region3
    $region8: #{tpu_custom_call.1} parent=1 // loop_exit
      _
    %493 = vsyncpa [#allocation3], 1
    %s494 = scalar_lea.sflag [#allocation3], 1
    %495 = vsyncpa %s494, 1
    %496 = vsyncpa [#allocation6], 1
    %s497 = scalar_lea.sflag [#allocation6], 1
    %498 = vsyncpa %s497, 1
    %499 = vsyncpa [#allocation4], 1
    %s500 = scalar_lea.sflag [#allocation4], 1
    %501 = vsyncpa %s500, 1

</llo_original>
